<compile_context>
chip_gen: v7x
topology: tpu7x:2x2x1
jax: 0.10.0
libtpu: 0.0.40
codegen_flags: <defaults>
</compile_context>

<pallas_src>
import jax
import jax.numpy as jnp
from jax.experimental import pallas as pl
from jax.experimental.pallas import tpu as pltpu

D_IN, D_H1, D_H2, D_OUT = 102, 64, 16, 2


def fnn_kernel(x_ref, w1_ref, b1_ref, w2_ref, b2_ref, w3_ref, b3_ref, o_ref):
    x = x_ref[...]                                                    # (TB, 102) bf16
    # Linear(102, 64) + ReLU   (bf16 x bf16 MXU matmul, f32 accumulate)
    h1 = jnp.dot(x, w1_ref[...], preferred_element_type=jnp.float32) + b1_ref[...]
    h1 = jnp.maximum(h1, 0.0).astype(jnp.bfloat16)
    # Linear(64, 16) + ReLU
    h2 = jnp.dot(h1, w2_ref[...], preferred_element_type=jnp.float32) + b2_ref[...]
    h2 = jnp.maximum(h2, 0.0).astype(jnp.bfloat16)
    # Dropout(p): identity at inference time (eval mode) -> no-op.
    # Linear(16, 2)
    out = jnp.dot(h2, w3_ref[...], preferred_element_type=jnp.float32) + b3_ref[...]
    o_ref[...] = out.astype(o_ref.dtype)


def fnn_forward(x, params, *, tb=1024):
    """x: (B, 102) f32.  params: (w1,b1,w2,b2,w3,b3) with W as [in, out], b as (1, out)."""
    w1, b1, w2, b2, w3, b3 = params
    B = x.shape[0]

    # bf16 for the streamed input and the (VMEM-resident) weight matrices; biases stay f32.
    x = x.astype(jnp.bfloat16)
    w1 = w1.astype(jnp.bfloat16)
    w2 = w2.astype(jnp.bfloat16)
    w3 = w3.astype(jnp.bfloat16)

    # Batch tile: multiple of 8 sublanes, capped at `tb`; pad batch so the grid divides evenly.
    b_pad8 = ((B + 7) // 8) * 8
    TB = min(tb, b_pad8)
    B_pad = ((B + TB - 1) // TB) * TB
    if B_pad != B:
        x = jnp.pad(x, ((0, B_pad - B), (0, 0)))

    grid = (B_pad // TB,)

    flops = 2 * B_pad * (D_IN * D_H1 + D_H1 * D_H2 + D_H2 * D_OUT)
    bytes_accessed = (
        x.size * x.dtype.itemsize
        + sum(int(a.size) * a.dtype.itemsize for a in (w1, b1, w2, b2, w3, b3))
        + B_pad * D_OUT * 4
    )

    def resident(shape):
        # Same block index every grid step -> Pallas keeps the buffer VMEM-resident (no re-DMA).
        return pl.BlockSpec(shape, lambda i: (0,) * len(shape))

    out = pl.pallas_call(
        fnn_kernel,
        out_shape=jax.ShapeDtypeStruct((B_pad, D_OUT), jnp.float32),
        grid=grid,
        in_specs=[
            pl.BlockSpec((TB, D_IN), lambda i: (i, 0)),   # streamed per step
            resident(w1.shape), resident(b1.shape),
            resident(w2.shape), resident(b2.shape),
            resident(w3.shape), resident(b3.shape),
        ],
        out_specs=pl.BlockSpec((TB, D_OUT), lambda i: (i, 0)),
        compiler_params=pltpu.CompilerParams(
            dimension_semantics=("parallel",),            # shards batch grid across TCs on v7x
        ),
        cost_estimate=pl.CostEstimate(
            flops=flops, transcendentals=0, bytes_accessed=bytes_accessed),
    )(x, w1, b1, w2, b2, w3, b3)

    return out[:B]


def init_params(key):
    """PyTorch-style Linear init: U(-1/sqrt(fan_in), 1/sqrt(fan_in)); W stored as [in, out]."""
    dims = [(D_IN, D_H1), (D_H1, D_H2), (D_H2, D_OUT)]
    params = []
    for fan_in, fan_out in dims:
        key, kw, kb = jax.random.split(key, 3)
        bound = 1.0 / jnp.sqrt(jnp.float32(fan_in))
        w = jax.random.uniform(kw, (fan_in, fan_out), jnp.float32, -bound, bound)
        b = jax.random.uniform(kb, (1, fan_out), jnp.float32, -bound, bound)
        params += [w, b]
    return params


def reference_forward(x, params):
    """Pure-JAX reference mirroring the kernel's bf16-input / f32-accumulate numerics."""
    w1, b1, w2, b2, w3, b3 = params
    xb = x.astype(jnp.bfloat16)
    w1b, w2b, w3b = (w.astype(jnp.bfloat16) for w in (w1, w2, w3))
    h1 = jnp.maximum(jnp.dot(xb, w1b, preferred_element_type=jnp.float32) + b1, 0.0)
    h1 = h1.astype(jnp.bfloat16)
    h2 = jnp.maximum(jnp.dot(h1, w2b, preferred_element_type=jnp.float32) + b2, 0.0)
    h2 = h2.astype(jnp.bfloat16)
    return jnp.dot(h2, w3b, preferred_element_type=jnp.float32) + b3


if __name__ == "__main__":
    key = jax.random.PRNGKey(0)
    key, kx1, kx2 = jax.random.split(key, 3)
    params = init_params(key)

    # Case 1: small batch, single grid step.
    B1 = 8
    x1 = jax.random.normal(kx1, (B1, D_IN), jnp.float32)
    out1 = jax.block_until_ready(fnn_forward(x1, params))
    ref1 = reference_forward(x1, params)
    assert out1.shape == (B1, D_OUT)
    assert jnp.allclose(out1, ref1, atol=1e-4, rtol=1e-4)

    # Case 2: multi-step batch grid with padding (exercises the tiled/pipelined path).
    B2 = 200
    x2 = jax.random.normal(kx2, (B2, D_IN), jnp.float32)
    out2 = jax.block_until_ready(fnn_forward(x2, params, tb=64))
    ref2 = reference_forward(x2, params)
    assert out2.shape == (B2, D_OUT)
    assert jnp.allclose(out2, ref2, atol=1e-4, rtol=1e-4)

    print("KERNEL_OK")
</pallas_src>

<mosaic_0001>
module attributes {stable_mosaic.version = 11 : i64} {
  func.func @fnn_kernel(%arg0: i32, %arg1: memref<8x102xbf16, #tpu.memory_space<vmem>>, %arg2: memref<102x64xbf16, #tpu.memory_space<vmem>>, %arg3: memref<1x64xf32, #tpu.memory_space<vmem>>, %arg4: memref<64x16xbf16, #tpu.memory_space<vmem>>, %arg5: memref<1x16xf32, #tpu.memory_space<vmem>>, %arg6: memref<16x2xbf16, #tpu.memory_space<vmem>>, %arg7: memref<1x2xf32, #tpu.memory_space<vmem>>, %arg8: memref<8x2xf32, #tpu.memory_space<vmem>>) attributes {dimension_semantics = [#tpu.dimension_semantics<parallel>], iteration_bounds = array<i64: 1>, scalar_prefetch = 0 : i64, scratch_operands = 0 : i64, tpu.core_type = #tpu.core_type<tc>, window_params = [{transform_indices = @transform_0, window_bounds = array<i64: 8, 102>}, {pipeline_mode = #tpu.pipeline_mode<synchronous>, transform_indices = @transform_1, window_bounds = array<i64: 102, 64>}, {pipeline_mode = #tpu.pipeline_mode<synchronous>, transform_indices = @transform_2, window_bounds = array<i64: 1, 64>}, {pipeline_mode = #tpu.pipeline_mode<synchronous>, transform_indices = @transform_3, window_bounds = array<i64: 64, 16>}, {pipeline_mode = #tpu.pipeline_mode<synchronous>, transform_indices = @transform_4, window_bounds = array<i64: 1, 16>}, {pipeline_mode = #tpu.pipeline_mode<synchronous>, transform_indices = @transform_5, window_bounds = array<i64: 16, 2>}, {pipeline_mode = #tpu.pipeline_mode<synchronous>, transform_indices = @transform_6, window_bounds = array<i64: 1, 2>}, {transform_indices = @transform_7, window_bounds = array<i64: 8, 2>}]} {
    %c0 = arith.constant 0 : index
    %c0_0 = arith.constant 0 : index
    %0 = vector.load %arg1[%c0, %c0_0] : memref<8x102xbf16, #tpu.memory_space<vmem>>, vector<8x102xbf16>
    %c0_1 = arith.constant 0 : index
    %c0_2 = arith.constant 0 : index
    %1 = vector.load %arg2[%c0_1, %c0_2] : memref<102x64xbf16, #tpu.memory_space<vmem>>, vector<102x64xbf16>
    %cst = arith.constant dense<0.000000e+00> : vector<8x64xf32>
    %2 = tpu.matmul %0, %1, %cst {dimension_numbers = #tpu.dot_dimension_numbers<[1], [0], [0], [1], [0, 0, 1, 1], [], []>} : vector<8x102xbf16>, vector<102x64xbf16>, vector<8x64xf32> -> vector<8x64xf32>
    %c0_3 = arith.constant 0 : index
    %c0_4 = arith.constant 0 : index
    %3 = vector.load %arg3[%c0_3, %c0_4] : memref<1x64xf32, #tpu.memory_space<vmem>>, vector<1x64xf32>
    %4 = vector.broadcast %3 : vector<1x64xf32> to vector<8x64xf32>
    %5 = arith.addf %2, %4 : vector<8x64xf32>
    %cst_5 = arith.constant 0.000000e+00 : f32
    %6 = vector.broadcast %cst_5 : f32 to vector<8x64xf32>
    %7 = arith.maximumf %5, %6 : vector<8x64xf32>
    %8 = arith.truncf %7 : vector<8x64xf32> to vector<8x64xbf16>
    %c0_6 = arith.constant 0 : index
    %c0_7 = arith.constant 0 : index
    %9 = vector.load %arg4[%c0_6, %c0_7] : memref<64x16xbf16, #tpu.memory_space<vmem>>, vector<64x16xbf16>
    %cst_8 = arith.constant dense<0.000000e+00> : vector<8x16xf32>
    %10 = tpu.matmul %8, %9, %cst_8 {dimension_numbers = #tpu.dot_dimension_numbers<[1], [0], [0], [1], [0, 0, 1, 1], [], []>} : vector<8x64xbf16>, vector<64x16xbf16>, vector<8x16xf32> -> vector<8x16xf32>
    %c0_9 = arith.constant 0 : index
    %c0_10 = arith.constant 0 : index
    %11 = vector.load %arg5[%c0_9, %c0_10] : memref<1x16xf32, #tpu.memory_space<vmem>>, vector<1x16xf32>
    %12 = vector.broadcast %11 : vector<1x16xf32> to vector<8x16xf32>
    %13 = arith.addf %10, %12 : vector<8x16xf32>
    %cst_11 = arith.constant 0.000000e+00 : f32
    %14 = vector.broadcast %cst_11 : f32 to vector<8x16xf32>
    %15 = arith.maximumf %13, %14 : vector<8x16xf32>
    %16 = arith.truncf %15 : vector<8x16xf32> to vector<8x16xbf16>
    %c0_12 = arith.constant 0 : index
    %c0_13 = arith.constant 0 : index
    %17 = vector.load %arg6[%c0_12, %c0_13] : memref<16x2xbf16, #tpu.memory_space<vmem>>, vector<16x2xbf16>
    %cst_14 = arith.constant dense<0.000000e+00> : vector<8x2xf32>
    %18 = tpu.matmul %16, %17, %cst_14 {dimension_numbers = #tpu.dot_dimension_numbers<[1], [0], [0], [1], [0, 0, 1, 1], [], []>} : vector<8x16xbf16>, vector<16x2xbf16>, vector<8x2xf32> -> vector<8x2xf32>
    %c0_15 = arith.constant 0 : index
    %c0_16 = arith.constant 0 : index
    %19 = vector.load %arg7[%c0_15, %c0_16] : memref<1x2xf32, #tpu.memory_space<vmem>>, vector<1x2xf32>
    %20 = vector.broadcast %19 : vector<1x2xf32> to vector<8x2xf32>
    %21 = arith.addf %18, %20 : vector<8x2xf32>
    %c0_17 = arith.constant 0 : index
    %c0_18 = arith.constant 0 : index
    %22 = vector.load %arg8[%c0_17, %c0_18] : memref<8x2xf32, #tpu.memory_space<vmem>>, vector<8x2xf32>
    tpu.vector_store %arg8[%c0_17, %c0_18], %21 {strides = array<i32>} : memref<8x2xf32, #tpu.memory_space<vmem>>, vector<8x2xf32>,
    return
  }
  func.func @transform_0(%arg0: i32) -> (i32, i32) {
    %c0_i32 = arith.constant 0 : i32
    %c0_i32_0 = arith.constant 0 : i32
    return %arg0, %c0_i32 : i32, i32
  }
  func.func @transform_1(%arg0: i32) -> (i32, i32) {
    %c0_i32 = arith.constant 0 : i32
    %c0_i32_0 = arith.constant 0 : i32
    %c0_i32_1 = arith.constant 0 : i32
    return %c0_i32, %c0_i32_0 : i32, i32
  }
  func.func @transform_2(%arg0: i32) -> (i32, i32) {
    %c0_i32 = arith.constant 0 : i32
    %c0_i32_0 = arith.constant 0 : i32
    %c0_i32_1 = arith.constant 0 : i32
    return %c0_i32, %c0_i32_0 : i32, i32
  }
  func.func @transform_3(%arg0: i32) -> (i32, i32) {
    %c0_i32 = arith.constant 0 : i32
    %c0_i32_0 = arith.constant 0 : i32
    %c0_i32_1 = arith.constant 0 : i32
    return %c0_i32, %c0_i32_0 : i32, i32
  }
  func.func @transform_4(%arg0: i32) -> (i32, i32) {
    %c0_i32 = arith.constant 0 : i32
    %c0_i32_0 = arith.constant 0 : i32
    %c0_i32_1 = arith.constant 0 : i32
    return %c0_i32, %c0_i32_0 : i32, i32
  }
  func.func @transform_5(%arg0: i32) -> (i32, i32) {
    %c0_i32 = arith.constant 0 : i32
    %c0_i32_0 = arith.constant 0 : i32
    %c0_i32_1 = arith.constant 0 : i32
    return %c0_i32, %c0_i32_0 : i32, i32
  }
  func.func @transform_6(%arg0: i32) -> (i32, i32) {
    %c0_i32 = arith.constant 0 : i32
    %c0_i32_0 = arith.constant 0 : i32
    %c0_i32_1 = arith.constant 0 : i32
    return %c0_i32, %c0_i32_0 : i32, i32
  }
  func.func @transform_7(%arg0: i32) -> (i32, i32) {
    %c0_i32 = arith.constant 0 : i32
    %c0_i32_0 = arith.constant 0 : i32
    return %arg0, %c0_i32 : i32, i32
  }
}

</mosaic_0001>

<llo_original>
// kernel: tpu_custom_call.1
$region0: #{tpu_custom_call.1}
  #allocation0 [shape = 'u32[]', space=smem, size = 0x4, offset = 0x4, fixed_abs, tag = 'smem constant byte address 0x4 - core index']
  #allocation1 [shape = 'u32[144,128]{1,0:T(1,128)}', space=vmem, size = 0x12000, scoped, tag = 'internal scratch']
  %s0 = inlined_call_operand.vmem [shape: bf16[8,102], index: 0, kind: input, shape index: {}]
  %s1 = inlined_call_operand.vmem [shape: bf16[102,64], index: 1, kind: input, shape index: {}]
  %s2 = inlined_call_operand.vmem [shape: f32[1,64], index: 2, kind: input, shape index: {}]
  %s3 = inlined_call_operand.vmem [shape: bf16[64,16], index: 3, kind: input, shape index: {}]
  %s4 = inlined_call_operand.vmem [shape: f32[1,16], index: 4, kind: input, shape index: {}]
  %s5 = inlined_call_operand.vmem [shape: bf16[16,2], index: 5, kind: input, shape index: {}]
  %s6 = inlined_call_operand.vmem [shape: f32[1,2], index: 6, kind: input, shape index: {}]
  %s7 = inlined_call_operand.vmem [shape: f32[8,2], index: 7, kind: output, shape index: {}]
  %s8 = sld [smem:[#allocation0]]
  $region38: #{tpu_custom_call.1} parent=0
    _
  %s10 = ssub.s32 1, %s8
  %s11 = scalar_select 0, %s10, %s8
  // Predicated region
  $region2: #{tpu_custom_call.1} parent=0 // pred_check
    _
  $region3: #{tpu_custom_call.1} parent=0 // pred_check_branch
    %13 = sbr.rel (0) target = $region5
  $region4: #{tpu_custom_call.1} parent=0 // pred_region
    _
  $region5: #{tpu_custom_call.1} parent=0 // pred_fallthru
    _
  // Predicated region
  $region6: #{tpu_custom_call.1} parent=0 // pred_check
    _
  $region7: #{tpu_custom_call.1} parent=0 // pred_check_branch
    %15 = sbr.rel (0) target = $region9
  $region8: #{tpu_custom_call.1} parent=0 // pred_region
    _
  $region9: #{tpu_custom_call.1} parent=0 // pred_fallthru
    _
  // Predicated region
  $region10: #{tpu_custom_call.1} parent=0 // pred_check
    _
  $region11: #{tpu_custom_call.1} parent=0 // pred_check_branch
    %17 = sbr.rel (0) target = $region13
  $region12: #{tpu_custom_call.1} parent=0 // pred_region
    _
  $region13: #{tpu_custom_call.1} parent=0 // pred_fallthru
    _
  // Predicated region
  $region14: #{tpu_custom_call.1} parent=0 // pred_check
    _
  $region15: #{tpu_custom_call.1} parent=0 // pred_check_branch
    %19 = sbr.rel (0) target = $region17
  $region16: #{tpu_custom_call.1} parent=0 // pred_region
    _
  $region17: #{tpu_custom_call.1} parent=0 // pred_fallthru
    _
  // Predicated region
  $region18: #{tpu_custom_call.1} parent=0 // pred_check
    _
  $region19: #{tpu_custom_call.1} parent=0 // pred_check_branch
    %21 = sbr.rel (0) target = $region21
  $region20: #{tpu_custom_call.1} parent=0 // pred_region
    _
  $region21: #{tpu_custom_call.1} parent=0 // pred_fallthru
    _
  // Predicated region
  $region22: #{tpu_custom_call.1} parent=0 // pred_check
    _
  $region23: #{tpu_custom_call.1} parent=0 // pred_check_branch
    %23 = sbr.rel (0) target = $region25
  $region24: #{tpu_custom_call.1} parent=0 // pred_region
    _
  $region25: #{tpu_custom_call.1} parent=0 // pred_fallthru
    _
  // Predicated region
  $region26: #{tpu_custom_call.1} parent=0 // pred_check
    _
  $region27: #{tpu_custom_call.1} parent=0 // pred_check_branch
    %25 = sbr.rel (0) target = $region29
  $region28: #{tpu_custom_call.1} parent=0 // pred_region
    _
  $region29: #{tpu_custom_call.1} parent=0 // pred_fallthru
    _
  %v27 = vld [vmem:[%s0] sm:$0xf]
  %v28 = vld [vmem:[%s1] sm:$0xf]
  %v29 = vld [vmem:[%s1 + $0x4] sm:$0xf]
  %v30 = vld [vmem:[%s1 + $0x8] sm:$0xf]
  %v31 = vld [vmem:[%s1 + $0xc] sm:$0xf]
  %v32 = vld [vmem:[%s1 + $0x10] sm:$0xf]
  %v33 = vld [vmem:[%s1 + $0x14] sm:$0xf]
  %v34 = vld [vmem:[%s1 + $0x18] sm:$0xf]
  %v35 = vld [vmem:[%s1 + $0x1c] sm:$0xf]
  %v36 = vld [vmem:[%s1 + $0x20] sm:$0xf]
  %v37 = vld [vmem:[%s1 + $0x24] sm:$0xf]
  %v38 = vld [vmem:[%s1 + $0x28] sm:$0xf]
  %v39 = vld [vmem:[%s1 + $0x2c] sm:$0xf]
  %v40 = vld [vmem:[%s1 + $0x30] sm:$0x7]
  %v41 = vld [vmem:[%s2] sm:$0x1]
  %v43 = vlaneseq
  %v44 = vshrl.u32 %v43, 7
  %v45 = vsub.s32 0, %v44
  %v46 = vrot.slane %v41, %v45
  %v61 = vunpack.c.l.b16 %v28
  %v62 = vunpack.c.l.b16 %v29
  %v63 = vunpack.c.l.b16 %v30
  %v64 = vunpack.c.l.b16 %v31
  %v65 = vunpack.c.l.b16 %v32
  %v66 = vunpack.c.l.b16 %v33
  %v67 = vunpack.c.l.b16 %v34
  %v68 = vunpack.c.l.b16 %v35
  %v69 = vunpack.c.l.b16 %v36
  %v70 = vunpack.c.l.b16 %v37
  %v71 = vunpack.c.l.b16 %v38
  %v72 = vunpack.c.l.b16 %v39
  %v73 = vunpack.c.l.b16 %v40
  %v74 = vpack.c.b16 %v62, %v61
  %v75 = vpack.c.b16 %v64, %v63
  %v76 = vpack.c.b16 %v66, %v65
  %v77 = vpack.c.b16 %v68, %v67
  %v78 = vpack.c.b16 %v70, %v69
  %v79 = vpack.c.b16 %v72, %v71
  %v80 = vpack.c.b16 %v73, %v73
  %vm87 = vcmask 834560
  %v89 = vsel %vm87, %v27, 0
  %vm91 = vcmask 1042432
  %v93 = vsel %vm91, %v80, 0
  %95 = vmatprep.subr.bf16.mxu0 0
  %96 = vmatpush1.bf16.msra.mxu0 %v74
  %97 = vmatprep.subr.bf16.mxu0 0
  %98 = vmatpush1.bf16.msra.mxu0 %v75
  %99 = vmatprep.subr.bf16.mxu0 0
  %100 = vmatpush1.bf16.msra.mxu0 %v76
  %101 = vmatprep.subr.bf16.mxu0 0
  %102 = vmatpush1.bf16.msra.mxu0 %v77
  %103 = vmatprep.subr.bf16.mxu0 0
  %104 = vmatpush1.bf16.msra.mxu0 %v78
  %105 = vmatprep.subr.bf16.mxu0 0
  %106 = vmatpush1.bf16.msra.mxu0 %v79
  %107 = vmatprep.subr.bf16.mxu0 0
  %108 = vmatpush1.bf16.msra.mxu0 %v93
  %109 = vmatprep.subr.bf16.mxu0 0
  %110 = vmatpush1.bf16.msra.mxu0 0
  %111 = vmatprep.subr.bf16.mxu0 0
  %112 = vmatpush1.bf16.msra.mxu0 0
  %113 = vmatprep.subr.bf16.mxu0 0
  %114 = vmatpush1.bf16.msra.mxu0 0
  %115 = vmatprep.subr.bf16.mxu0 0
  %116 = vmatpush1.bf16.msra.mxu0 0
  %117 = vmatprep.subr.bf16.mxu0 0
  %118 = vmatpush1.bf16.msra.mxu0 0
  %119 = vmatprep.subr.bf16.mxu0 0
  %120 = vmatpush1.bf16.msra.mxu0 0
  %121 = vmatprep.subr.bf16.mxu0 0
  %122 = vmatpush1.bf16.msra.mxu0 0
  %123 = vmatprep.subr.bf16.mxu0 0
  %124 = vmatpush1.bf16.msra.mxu0 0
  %125 = vmatprep.subr.bf16.mxu0 0
  %126 = vmatpush1.bf16.msra.mxu0 0
  %127 = vmatprep.mubr.bf16.mxu0 0
  %128 = vmatmul.mubr.bf16.gmra.mrb[0].mxu0 %v89
  %v129 = vpop.f32.mrb[0].mxu0
  %v130 = vadd.f32 %v46, %v129
  %v131 = vpop.f32.mrb[0].mxu0
  %v132 = vpop.f32.mrb[0].mxu0
  %v133 = vpop.f32.mrb[0].mxu0
  %134 = vdwg.mxu0
  %v135 = vmax.f32 %v130, 0.0
  %v136 = vpack.c.bf16 %v135, %v135
  %v137 = vld [vmem:[%s3] sm:$0xf]
  %v138 = vld [vmem:[%s3 + $0x4] sm:$0xf]
  %v139 = vld [vmem:[%s3 + $0x8] sm:$0xf]
  %v140 = vld [vmem:[%s3 + $0xc] sm:$0xf]
  %v141 = vld [vmem:[%s3 + $0x10] sm:$0xf]
  %v142 = vld [vmem:[%s3 + $0x14] sm:$0xf]
  %v143 = vld [vmem:[%s3 + $0x18] sm:$0xf]
  %v144 = vld [vmem:[%s3 + $0x1c] sm:$0xf]
  %v145 = vld [vmem:[%s4] sm:$0x1]
  %v147 = vlaneseq
  %v148 = vshrl.u32 %v147, 7
  %v149 = vsub.s32 0, %v148
  %v150 = vrot.slane %v145, %v149
  %v160 = vunpack.c.l.b16 %v137
  %v161 = vunpack.c.l.b16 %v138
  %v162 = vunpack.c.l.b16 %v139
  %v163 = vunpack.c.l.b16 %v140
  %v164 = vunpack.c.l.b16 %v141
  %v165 = vunpack.c.l.b16 %v142
  %v166 = vunpack.c.l.b16 %v143
  %v167 = vunpack.c.l.b16 %v144
  %v168 = vpack.c.b16 %v161, %v160
  %v169 = vpack.c.b16 %v163, %v162
  %v170 = vpack.c.b16 %v165, %v164
  %v171 = vpack.c.b16 %v167, %v166
  %vm176 = vcmask 523264
  %v178 = vsel %vm176, %v136, 0
  %180 = vmatprep.subr.bf16.mxu0 0
  %181 = vmatpush1.bf16.msra.mxu0 %v168
  %182 = vmatprep.subr.bf16.mxu0 0
  %183 = vmatpush1.bf16.msra.mxu0 %v169
  %184 = vmatprep.subr.bf16.mxu0 0
  %185 = vmatpush1.bf16.msra.mxu0 %v170
  %186 = vmatprep.subr.bf16.mxu0 0
  %187 = vmatpush1.bf16.msra.mxu0 %v171
  %188 = vmatprep.subr.bf16.mxu0 0
  %189 = vmatpush1.bf16.msra.mxu0 0
  %190 = vmatprep.subr.bf16.mxu0 0
  %191 = vmatpush1.bf16.msra.mxu0 0
  %192 = vmatprep.subr.bf16.mxu0 0
  %193 = vmatpush1.bf16.msra.mxu0 0
  %194 = vmatprep.subr.bf16.mxu0 0
  %195 = vmatpush1.bf16.msra.mxu0 0
  %196 = vmatprep.subr.bf16.mxu0 0
  %197 = vmatpush1.bf16.msra.mxu0 0
  %198 = vmatprep.subr.bf16.mxu0 0
  %199 = vmatpush1.bf16.msra.mxu0 0
  %200 = vmatprep.subr.bf16.mxu0 0
  %201 = vmatpush1.bf16.msra.mxu0 0
  %202 = vmatprep.subr.bf16.mxu0 0
  %203 = vmatpush1.bf16.msra.mxu0 0
  %204 = vmatprep.subr.bf16.mxu0 0
  %205 = vmatpush1.bf16.msra.mxu0 0
  %206 = vmatprep.subr.bf16.mxu0 0
  %207 = vmatpush1.bf16.msra.mxu0 0
  %208 = vmatprep.subr.bf16.mxu0 0
  %209 = vmatpush1.bf16.msra.mxu0 0
  %210 = vmatprep.subr.bf16.mxu0 0
  %211 = vmatpush1.bf16.msra.mxu0 0
  %212 = vmatprep.mubr.bf16.mxu0 0
  %213 = vmatmul.mubr.bf16.gmra.mrb[0].mxu0 %v178
  %v214 = vpop.f32.mrb[0].mxu0
  %v215 = vadd.f32 %v150, %v214
  %v216 = vpop.f32.mrb[0].mxu0
  %v217 = vpop.f32.mrb[0].mxu0
  %v218 = vpop.f32.mrb[0].mxu0
  %219 = vdwg.mxu0
  %v220 = vmax.f32 %v215, 0.0
  %v221 = vpack.c.bf16 %v220, %v220
  %v222 = vld [vmem:[%s5] sm:$0xf]
  %v223 = vld [vmem:[%s5 + $0x4] sm:$0xf]
  %v224 = vld [vmem:[%s6] sm:$0x1]
  %v226 = vlaneseq
  %v227 = vshrl.u32 %v226, 7
  %v228 = vsub.s32 0, %v227
  %v229 = vrot.slane %v224, %v228
  %v233 = vunpack.c.l.b16 %v222
  %v234 = vunpack.c.l.b16 %v223
  %v235 = vpack.c.b16 %v234, %v233
  %vm237 = vcmask 130048
  %v239 = vsel %vm237, %v221, 0
  %241 = vmatprep.subr.bf16.mxu0 0
  %242 = vmatpush1.bf16.msra.mxu0 %v235
  %243 = vmatprep.subr.bf16.mxu0 0
  %244 = vmatpush1.bf16.msra.mxu0 0
  %245 = vmatprep.subr.bf16.mxu0 0
  %246 = vmatpush1.bf16.msra.mxu0 0
  %247 = vmatprep.subr.bf16.mxu0 0
  %248 = vmatpush1.bf16.msra.mxu0 0
  %249 = vmatprep.subr.bf16.mxu0 0
  %250 = vmatpush1.bf16.msra.mxu0 0
  %251 = vmatprep.subr.bf16.mxu0 0
  %252 = vmatpush1.bf16.msra.mxu0 0
  %253 = vmatprep.subr.bf16.mxu0 0
  %254 = vmatpush1.bf16.msra.mxu0 0
  %255 = vmatprep.subr.bf16.mxu0 0
  %256 = vmatpush1.bf16.msra.mxu0 0
  %257 = vmatprep.subr.bf16.mxu0 0
  %258 = vmatpush1.bf16.msra.mxu0 0
  %259 = vmatprep.subr.bf16.mxu0 0
  %260 = vmatpush1.bf16.msra.mxu0 0
  %261 = vmatprep.subr.bf16.mxu0 0
  %262 = vmatpush1.bf16.msra.mxu0 0
  %263 = vmatprep.subr.bf16.mxu0 0
  %264 = vmatpush1.bf16.msra.mxu0 0
  %265 = vmatprep.subr.bf16.mxu0 0
  %266 = vmatpush1.bf16.msra.mxu0 0
  %267 = vmatprep.subr.bf16.mxu0 0
  %268 = vmatpush1.bf16.msra.mxu0 0
  %269 = vmatprep.subr.bf16.mxu0 0
  %270 = vmatpush1.bf16.msra.mxu0 0
  %271 = vmatprep.subr.bf16.mxu0 0
  %272 = vmatpush1.bf16.msra.mxu0 0
  %273 = vmatprep.mubr.bf16.mxu0 0
  %274 = vmatmul.mubr.bf16.gmra.mrb[0].mxu0 %v239
  %v275 = vpop.f32.mrb[0].mxu0
  %v276 = vadd.f32 %v229, %v275
  %v277 = vpop.f32.mrb[0].mxu0
  %v278 = vpop.f32.mrb[0].mxu0
  %v279 = vpop.f32.mrb[0].mxu0
  %280 = vdwg.mxu0
  %vm281 = vcmask 15360
  %282 = vst.msk [vmem:[%s7] sm:$0xff] %vm281, %v276
  // Predicated region
  $region30: #{tpu_custom_call.1} parent=0 // pred_check
    _
  $region31: #{tpu_custom_call.1} parent=0 // pred_check_branch
    %284 = sbr.rel (0) target = $region33
  $region32: #{tpu_custom_call.1} parent=0 // pred_region
    _
  $region33: #{tpu_custom_call.1} parent=0 // pred_fallthru
    _
  // Predicated region
  $region34: #{tpu_custom_call.1} parent=0 // pred_check
    _
  $region35: #{tpu_custom_call.1} parent=0 // pred_check_branch
    %286 = sbr.rel (0) target = $region37
  $region36: #{tpu_custom_call.1} parent=0 // pred_region
    _
  $region37: #{tpu_custom_call.1} parent=0 // pred_fallthru
    _

</llo_original>
